<compile_context>
chip_gen: v7x
topology: tpu7x:2x2x1
jax: 0.10.0
libtpu: 0.0.40
codegen_flags: <defaults>
</compile_context>

<pallas_src>
import functools

import jax
import jax.numpy as jnp
from jax import lax
from jax.experimental import pallas as pl
from jax.experimental.pallas import tpu as pltpu

EPS = 1e-5

# (rows, 1) f32 in VMEM costs rows*512 B (lane padding); keep scale/shift
# fully resident only while that stays small, else fall back to row blocks.
_SCALE_RESIDENT_MAX_ROWS = 4096


# --------------------------------------------------------------------------- #
# Pass 1: streaming global statistics (per row-chunk partials)
# --------------------------------------------------------------------------- #
def _cbn_stats_kernel(feat_ref, stats_ref, acc, *, hw_true, block_rows, block_hw):
    """Accumulate (count, mean, M2) over this chunk's feature tiles.

    Grid = (chunks[parallel], row_tiles[arbitrary], col_tiles[arbitrary]).
    One walk per tile (s1, s2), shifted per-tile M2, then a Chan/Welford
    combine with an explicit running count in SMEM (robust to tile sizes /
    padding).  Zero lane-padding is stats-invariant because only `hw_true`
    columns are counted and zeros contribute nothing to s1/s2.
    """
    i = pl.program_id(1)          # row-tile index within this chunk
    j = pl.program_id(2)          # column-tile index

    @pl.when((i == 0) & (j == 0))
    def _():
        acc[0] = jnp.float32(0.0)   # running count
        acc[1] = jnp.float32(0.0)   # running mean
        acc[2] = jnp.float32(0.0)   # running M2

    x = feat_ref[...]                                   # (block_rows, block_hw)
    s1 = jnp.sum(x)
    s2 = jnp.sum(x * x)

    # number of valid (non-padded) elements in this tile
    valid_cols = jnp.minimum(hw_true - j * block_hw, block_hw).astype(jnp.float32)
    n_b = valid_cols * jnp.float32(block_rows)
    mean_b = s1 / n_b
    m2_b = s2 - s1 * mean_b                             # shifted form (stable)

    n_a = acc[0]
    n_ab = n_a + n_b
    delta = mean_b - acc[1]
    acc[1] = acc[1] + delta * (n_b / n_ab)
    acc[2] = acc[2] + m2_b + (delta * delta) * (n_a * n_b / n_ab)
    acc[0] = n_ab

    # Last tile of this chunk: publish the chunk's partial (count, mean, M2)
    # packed into lanes 0/1/2 of an (8, 128) slab.
    @pl.when((i == pl.num_programs(1) - 1) & (j == pl.num_programs(2) - 1))
    def _():
        lane = lax.broadcasted_iota(jnp.int32, (8, 128), 1)
        stats_ref[...] = jnp.where(
            lane == 0, acc[0],
            jnp.where(lane == 1, acc[1],
                      jnp.where(lane == 2, acc[2], jnp.float32(0.0))))


# --------------------------------------------------------------------------- #
# Pass 2: mem-bound elementwise apply, one FMA per element
# --------------------------------------------------------------------------- #
def _cbn_apply_kernel(feat_ref, scale_ref, shift_ref, out_ref, *,
                      block_rows, resident_scale):
    if resident_scale:
        # scale/shift are the full (B*C, 1) vectors, resident in VMEM
        r0 = pl.multiple_of(pl.program_id(0) * block_rows, 8)
        sc = scale_ref[pl.ds(r0, block_rows), :]
        sh = shift_ref[pl.ds(r0, block_rows), :]
    else:
        sc = scale_ref[...]
        sh = shift_ref[...]
    out_ref[...] = feat_ref[...] * sc + sh


# --------------------------------------------------------------------------- #
# Tiling / wrapper
# --------------------------------------------------------------------------- #
def _vmem_capacity_bytes():
    try:
        return int(pltpu.get_tpu_info().vmem_capacity_bytes)
    except Exception:
        return 64 * 1024 * 1024          # conservative (v7x-sized VMEM)


def _choose_tiling(bc, hwp):
    """Pick (block_rows, block_hw, vmem_limit): the biggest feature block the
    chip's VMEM comfortably holds double-buffered (review: ~8 MiB on
    128-MiB-VMEM v5e/v6e, ~4 MiB on 64-MiB-VMEM v7x)."""
    elem = 4
    if _vmem_capacity_bytes() >= 100 * 1024 * 1024:     # v5e / v6e (128 MiB)
        target, vmem_limit = 8 * 1024 * 1024, 64 * 1024 * 1024
    else:                                               # v7x (64 MiB)
        target, vmem_limit = 4 * 1024 * 1024, 48 * 1024 * 1024

    row_divs = [r for r in range(8, bc + 1, 8) if bc % r == 0]
    if not row_divs:                     # bc < 8 or no multiple-of-8 divisor
        block_rows = bc
    else:
        fitting = [r for r in row_divs if r * hwp * elem <= target]
        block_rows = max(fitting) if fitting else min(row_divs)

    if block_rows * hwp * elem <= target:
        block_hw = hwp
    else:                                # very large H*W: tile the lane dim too
        max_cols = max(128, target // (block_rows * elem))
        col_divs = [c for c in range(128, hwp + 1, 128)
                    if hwp % c == 0 and c <= max_cols]
        block_hw = max(col_divs) if col_divs else 128
    return block_rows, block_hw, vmem_limit


def cbn_forward(feature, lstm_emb, params):
    """feature: (B, C, H, W) f32 NCHW, lstm_emb: (B, lstm_size) f32."""
    B, C, H, W = feature.shape
    HW = H * W
    BC = B * C
    n_total = BC * HW

    # lane-dense 2-D layout, lanes padded to a multiple of 128 (unmasked vst)
    HWp = ((HW + 127) // 128) * 128
    feat2d = feature.reshape(BC, HW)
    if HWp != HW:
        feat2d = jnp.pad(feat2d, ((0, 0), (0, HWp - HW)))

    block_rows, block_hw, vmem_limit = _choose_tiling(BC, HWp)
    t_rows = BC // block_rows
    t_hw = HWp // block_hw

    # leading "parallel" chunk axis: the two v7x TensorCores each stream half
    # of pass 1's row tiles (neutral on single-core v5e/v6e).
    nc = 2 if (t_rows >= 2 and t_rows % 2 == 0) else 1
    t_r = t_rows // nc

    # ---- pass 1: per-chunk partial (count, mean, M2) ----
    stats = pl.pallas_call(
        functools.partial(_cbn_stats_kernel, hw_true=HW,
                          block_rows=block_rows, block_hw=block_hw),
        out_shape=jax.ShapeDtypeStruct((nc * 8, 128), jnp.float32),
        grid=(nc, t_r, t_hw),
        in_specs=[pl.BlockSpec((block_rows, block_hw),
                               lambda c, i, j: (c * t_r + i, j))],
        out_specs=pl.BlockSpec((8, 128), lambda c, i, j: (c, 0)),
        scratch_shapes=[pltpu.SMEM((3,), jnp.float32)],
        compiler_params=pltpu.CompilerParams(
            dimension_semantics=("parallel", "arbitrary", "arbitrary"),
            vmem_limit_bytes=vmem_limit),
    )(feat2d)

    # ---- tiny XLA glue between the passes (per perf review): combine the
    # per-chunk partials, run the conditioning MLPs, fold mean / inv_std into
    # per-(B, C) scale & shift. A few thousand FLOPs total. ----
    stats = stats.reshape(nc, 8, 128)
    cnt, mu, m2 = stats[:, 0, 0], stats[:, 0, 1], stats[:, 0, 2]
    tot_n, tot_mu, tot_m2 = cnt[0], mu[0], m2[0]
    for c in range(1, nc):                               # Chan pairwise merge
        n_ab = tot_n + cnt[c]
        delta = mu[c] - tot_mu
        tot_mu = tot_mu + delta * (cnt[c] / n_ab)
        tot_m2 = tot_m2 + m2[c] + delta * delta * (tot_n * cnt[c] / n_ab)
        tot_n = n_ab
    mean = tot_mu
    var = tot_m2 / jnp.float32(n_total - 1)              # unbiased (torch.var)
    inv_std = lax.rsqrt(var + jnp.float32(EPS))

    hg = jnp.maximum(lstm_emb @ params["w1g"] + params["b1g"], 0.0)
    dg = hg @ params["w2g"] + params["b2g"]
    hb = jnp.maximum(lstm_emb @ params["w1b"] + params["b1b"], 0.0)
    db = hb @ params["w2b"] + params["b2b"]
    gammas = params["gammas"] + dg                       # (B, C)
    betas = params["betas"] + db
    scale2d = gammas * inv_std                           # fold norm into affine
    shift2d = betas - mean * scale2d
    scale = scale2d.reshape(BC, 1)
    shift = shift2d.reshape(BC, 1)

    # ---- pass 2: out = feat * scale + shift, both axes parallel ----
    resident = BC <= _SCALE_RESIDENT_MAX_ROWS
    if resident:
        scale_spec = pl.BlockSpec((BC, 1), lambda i, j: (0, 0))   # one DMA total
        shift_spec = pl.BlockSpec((BC, 1), lambda i, j: (0, 0))
    else:
        scale_spec = pl.BlockSpec((block_rows, 1), lambda i, j: (i, 0))
        shift_spec = pl.BlockSpec((block_rows, 1), lambda i, j: (i, 0))

    out2d = pl.pallas_call(
        functools.partial(_cbn_apply_kernel, block_rows=block_rows,
                          resident_scale=resident),
        out_shape=jax.ShapeDtypeStruct((BC, HWp), jnp.float32),
        grid=(t_rows, t_hw),
        in_specs=[
            pl.BlockSpec((block_rows, block_hw), lambda i, j: (i, j)),
            scale_spec,
            shift_spec,
        ],
        out_specs=pl.BlockSpec((block_rows, block_hw), lambda i, j: (i, j)),
        compiler_params=pltpu.CompilerParams(
            dimension_semantics=("parallel", "parallel"),
            vmem_limit_bytes=vmem_limit),
    )(feat2d, scale, shift)

    if HWp != HW:
        out2d = out2d[:, :HW]
    out = out2d.reshape(B, C, H, W)
    # CBN returns lstm_emb unchanged (it flows through the nn.Sequential chain)
    return out, lstm_emb


# --------------------------------------------------------------------------- #
# Params / reference / self-test
# --------------------------------------------------------------------------- #
def init_params(key, lstm_size, emb_size, out_size, batch_size, channels):
    """Deterministic synthetic init matching the module's __init__ shapes."""
    def xavier(k, fan_in, fan_out):
        bound = (6.0 / (fan_in + fan_out)) ** 0.5
        return jax.random.uniform(k, (fan_in, fan_out), jnp.float32, -bound, bound)

    k = jax.random.split(key, 4)
    return {
        # fc_gamma
        "w1g": xavier(k[0], lstm_size, emb_size),
        "b1g": jnp.full((1, emb_size), 0.1, jnp.float32),
        "w2g": xavier(k[1], emb_size, out_size),
        "b2g": jnp.full((1, out_size), 0.1, jnp.float32),
        # fc_beta
        "w1b": xavier(k[2], lstm_size, emb_size),
        "b1b": jnp.full((1, emb_size), 0.1, jnp.float32),
        "w2b": xavier(k[3], emb_size, out_size),
        "b2b": jnp.full((1, out_size), 0.1, jnp.float32),
        # learned per-(batch, channel) affine params
        "betas": jnp.zeros((batch_size, channels), jnp.float32),
        "gammas": jnp.ones((batch_size, channels), jnp.float32),
    }


def cbn_reference(feature, lstm_emb, params):
    """Pure-JAX reference mirroring the PyTorch forward exactly (unfused)."""
    hg = jnp.maximum(lstm_emb @ params["w1g"] + params["b1g"], 0.0)
    dg = hg @ params["w2g"] + params["b2g"]
    hb = jnp.maximum(lstm_emb @ params["w1b"] + params["b1b"], 0.0)
    db = hb @ params["w2b"] + params["b2b"]
    gammas = params["gammas"] + dg
    betas = params["betas"] + db
    mean = jnp.mean(feature)
    var = jnp.var(feature, ddof=1)       # torch.var default is unbiased
    normed = (feature - mean) / jnp.sqrt(var + EPS)
    return normed * gammas[:, :, None, None] + betas[:, :, None, None]


if __name__ == "__main__":
    # Small shapes consistent with the module: out_size must equal channels.
    batch_size, channels, height, width = 2, 4, 16, 16
    lstm_size, emb_size, out_size = 32, 32, channels

    key = jax.random.PRNGKey(0)
    k_feat, k_lstm, k_params = jax.random.split(key, 3)

    feature = jax.random.normal(k_feat, (batch_size, channels, height, width), jnp.float32)
    lstm_emb = jax.random.normal(k_lstm, (batch_size, lstm_size), jnp.float32)
    params = init_params(k_params, lstm_size, emb_size, out_size, batch_size, channels)

    fwd = jax.jit(cbn_forward)
    out, lstm_out = fwd(feature, lstm_emb, params)
    out = jax.block_until_ready(out)

    ref = cbn_reference(feature, lstm_emb, params)
    assert out.shape == (batch_size, channels, height, width)
    assert jnp.allclose(out, ref, atol=1e-4, rtol=1e-4), "kernel mismatch vs reference"
    assert jnp.array_equal(lstm_out, lstm_emb)

    print("KERNEL_OK")
</pallas_src>

<mosaic_0001>
module attributes {stable_mosaic.version = 11 : i64} {
  func.func @_cbn_stats_kernel(%arg0: i32, %arg1: i32, %arg2: i32, %arg3: memref<8x256xf32, #tpu.memory_space<vmem>>, %arg4: memref<8x128xf32, #tpu.memory_space<vmem>>, %arg5: memref<3xf32, #tpu.memory_space<smem>>) attributes {dimension_semantics = [#tpu.dimension_semantics<parallel>, #tpu.dimension_semantics<arbitrary>, #tpu.dimension_semantics<arbitrary>], iteration_bounds = array<i64: 1, 1, 1>, scalar_prefetch = 0 : i64, scratch_operands = 1 : i64, tpu.core_type = #tpu.core_type<tc>, window_params = [{transform_indices = @transform_0, window_bounds = array<i64: 8, 256>}, {transform_indices = @transform_1, window_bounds = array<i64: 8, 128>}]} {
    %c0_i32 = arith.constant 0 : i32
    %0 = arith.cmpi eq, %arg1, %c0_i32 : i32
    %c0_i32_0 = arith.constant 0 : i32
    %1 = arith.cmpi eq, %arg2, %c0_i32_0 : i32
    %2 = arith.andi %0, %1 : i1
    %3 = arith.extui %2 : i1 to i32
    %c0_i32_1 = arith.constant 0 : i32
    %4 = arith.cmpi ne, %3, %c0_i32_1 : i32
    scf.if %4 {
      %cst_15 = arith.constant 0.000000e+00 : f32
      %c0_16 = arith.constant 0 : index
      %46 = memref.load %arg5[%c0_16] : memref<3xf32, #tpu.memory_space<smem>>
      memref.store %cst_15, %arg5[%c0_16] : memref<3xf32, #tpu.memory_space<smem>>
      %cst_17 = arith.constant 0.000000e+00 : f32
      %c1_18 = arith.constant 1 : index
      %47 = memref.load %arg5[%c1_18] : memref<3xf32, #tpu.memory_space<smem>>
      memref.store %cst_17, %arg5[%c1_18] : memref<3xf32, #tpu.memory_space<smem>>
      %cst_19 = arith.constant 0.000000e+00 : f32
      %c2_20 = arith.constant 2 : index
      %48 = memref.load %arg5[%c2_20] : memref<3xf32, #tpu.memory_space<smem>>
      memref.store %cst_19, %arg5[%c2_20] : memref<3xf32, #tpu.memory_space<smem>>
    } else {
    }
    %c0 = arith.constant 0 : index
    %c0_2 = arith.constant 0 : index
    %5 = vector.load %arg3[%c0, %c0_2] : memref<8x256xf32, #tpu.memory_space<vmem>>, vector<8x256xf32>
    %6 = vector.shape_cast %5 : vector<8x256xf32> to vector<1x8x256xf32>
    %cst = arith.constant dense<0.000000e+00> : vector<1xf32>
    %7 = vector.multi_reduction <add>, %6, %cst [1, 2] : vector<1x8x256xf32> to vector<1xf32>
    %8 = vector.shape_cast %7 : vector<1xf32> to vector<1x1x1xf32>
    %9 = vector.extract %8[0, 0, 0] : f32 from vector<1x1x1xf32>
    %10 = arith.mulf %5, %5 : vector<8x256xf32>
    %11 = vector.shape_cast %10 : vector<8x256xf32> to vector<1x8x256xf32>
    %cst_3 = arith.constant dense<0.000000e+00> : vector<1xf32>
    %12 = vector.multi_reduction <add>, %11, %cst_3 [1, 2] : vector<1x8x256xf32> to vector<1xf32>
    %13 = vector.shape_cast %12 : vector<1xf32> to vector<1x1x1xf32>
    %14 = vector.extract %13[0, 0, 0] : f32 from vector<1x1x1xf32>
    %c256_i32 = arith.constant 256 : i32
    %15 = arith.muli %arg2, %c256_i32 : i32
    %c256_i32_4 = arith.constant 256 : i32
    %16 = arith.subi %c256_i32_4, %15 : i32
    %c256_i32_5 = arith.constant 256 : i32
    %17 = arith.minsi %16, %c256_i32_5 : i32
    %18 = arith.sitofp %17 : i32 to f32
    %cst_6 = arith.constant 8.000000e+00 : f32
    %19 = arith.mulf %18, %cst_6 : f32
    %20 = arith.divf %9, %19 : f32
    %21 = arith.mulf %9, %20 : f32
    %22 = arith.subf %14, %21 : f32
    %c0_7 = arith.constant 0 : index
    %23 = memref.load %arg5[%c0_7] : memref<3xf32, #tpu.memory_space<smem>>
    %24 = arith.addf %23, %19 : f32
    %c1 = arith.constant 1 : index
    %25 = memref.load %arg5[%c1] : memref<3xf32, #tpu.memory_space<smem>>
    %26 = arith.subf %20, %25 : f32
    %c1_8 = arith.constant 1 : index
    %27 = memref.load %arg5[%c1_8] : memref<3xf32, #tpu.memory_space<smem>>
    %28 = arith.divf %19, %24 : f32
    %29 = arith.mulf %26, %28 : f32
    %30 = arith.addf %27, %29 : f32
    %c1_9 = arith.constant 1 : index
    %31 = memref.load %arg5[%c1_9] : memref<3xf32, #tpu.memory_space<smem>>
    memref.store %30, %arg5[%c1_9] : memref<3xf32, #tpu.memory_space<smem>>
    %c2 = arith.constant 2 : index
    %32 = memref.load %arg5[%c2] : memref<3xf32, #tpu.memory_space<smem>>
    %33 = arith.addf %32, %22 : f32
    %34 = arith.mulf %26, %26 : f32
    %35 = arith.mulf %23, %19 : f32
    %36 = arith.divf %35, %24 : f32
    %37 = arith.mulf %34, %36 : f32
    %38 = arith.addf %33, %37 : f32
    %c2_10 = arith.constant 2 : index
    %39 = memref.load %arg5[%c2_10] : memref<3xf32, #tpu.memory_space<smem>>
    memref.store %38, %arg5[%c2_10] : memref<3xf32, #tpu.memory_space<smem>>
    %c0_11 = arith.constant 0 : index
    %40 = memref.load %arg5[%c0_11] : memref<3xf32, #tpu.memory_space<smem>>
    memref.store %24, %arg5[%c0_11] : memref<3xf32, #tpu.memory_space<smem>>
    %c0_i32_12 = arith.constant 0 : i32
    %41 = arith.cmpi eq, %arg1, %c0_i32_12 : i32
    %c0_i32_13 = arith.constant 0 : i32
    %42 = arith.cmpi eq, %arg2, %c0_i32_13 : i32
    %43 = arith.andi %41, %42 : i1
    %44 = arith.extui %43 : i1 to i32
    %c0_i32_14 = arith.constant 0 : i32
    %45 = arith.cmpi ne, %44, %c0_i32_14 : i32
    scf.if %45 {
      %46 = tpu.iota {dimensions = array<i32: 1>} : vector<8x128xi32>
      %c0_i32_15 = arith.constant 0 : i32
      %47 = vector.broadcast %c0_i32_15 : i32 to vector<8x128xi32>
      %48 = arith.cmpi eq, %46, %47 : vector<8x128xi32>
      %c0_16 = arith.constant 0 : index
      %49 = memref.load %arg5[%c0_16] : memref<3xf32, #tpu.memory_space<smem>>
      %c1_i32 = arith.constant 1 : i32
      %50 = vector.broadcast %c1_i32 : i32 to vector<8x128xi32>
      %51 = arith.cmpi eq, %46, %50 : vector<8x128xi32>
      %c1_17 = arith.constant 1 : index
      %52 = memref.load %arg5[%c1_17] : memref<3xf32, #tpu.memory_space<smem>>
      %c2_i32 = arith.constant 2 : i32
      %53 = vector.broadcast %c2_i32 : i32 to vector<8x128xi32>
      %54 = arith.cmpi eq, %46, %53 : vector<8x128xi32>
      %c2_18 = arith.constant 2 : index
      %55 = memref.load %arg5[%c2_18] : memref<3xf32, #tpu.memory_space<smem>>
      %cst_19 = arith.constant 0.000000e+00 : f32
      %56 = vector.broadcast %55 : f32 to vector<8x128xf32>
      %57 = vector.broadcast %cst_19 : f32 to vector<8x128xf32>
      %58 = arith.select %54, %56, %57 : vector<8x128xi1>, vector<8x128xf32>
      %59 = vector.broadcast %52 : f32 to vector<8x128xf32>
      %60 = arith.select %51, %59, %58 : vector<8x128xi1>, vector<8x128xf32>
      %61 = vector.broadcast %49 : f32 to vector<8x128xf32>
      %62 = arith.select %48, %61, %60 : vector<8x128xi1>, vector<8x128xf32>
      %c0_20 = arith.constant 0 : index
      %c0_21 = arith.constant 0 : index
      %63 = vector.load %arg4[%c0_20, %c0_21] : memref<8x128xf32, #tpu.memory_space<vmem>>, vector<8x128xf32>
      tpu.vector_store %arg4[%c0_20, %c0_21], %62 {strides = array<i32>} : memref<8x128xf32, #tpu.memory_space<vmem>>, vector<8x128xf32>,
    } else {
    }
    return
  }
  func.func @transform_0(%arg0: i32, %arg1: i32, %arg2: i32) -> (i32, i32) {
    %c1_i32 = arith.constant 1 : i32
    %0 = arith.muli %arg0, %c1_i32 : i32
    %1 = arith.addi %0, %arg1 : i32
    %c0_i32 = arith.constant 0 : i32
    return %1, %arg2 : i32, i32
  }
  func.func @transform_1(%arg0: i32, %arg1: i32, %arg2: i32) -> (i32, i32) {
    %c0_i32 = arith.constant 0 : i32
    %c0_i32_0 = arith.constant 0 : i32
    return %arg0, %c0_i32 : i32, i32
  }
}

module attributes {stable_mosaic.version = 11 : i64} {
  func.func @_cbn_apply_kernel(%arg0: i32, %arg1: i32, %arg2: memref<8x256xf32, #tpu.memory_space<vmem>>, %arg3: memref<8x1xf32, #tpu.memory_space<vmem>>, %arg4: memref<8x1xf32, #tpu.memory_space<vmem>>, %arg5: memref<8x256xf32, #tpu.memory_space<vmem>>) attributes {dimension_semantics = [#tpu.dimension_semantics<parallel>, #tpu.dimension_semantics<parallel>], iteration_bounds = array<i64: 1, 1>, scalar_prefetch = 0 : i64, scratch_operands = 0 : i64, tpu.core_type = #tpu.core_type<tc>, window_params = [{transform_indices = @transform_0, window_bounds = array<i64: 8, 256>}, {pipeline_mode = #tpu.pipeline_mode<synchronous>, transform_indices = @transform_1, window_bounds = array<i64: 8, 1>}, {pipeline_mode = #tpu.pipeline_mode<synchronous>, transform_indices = @transform_2, window_bounds = array<i64: 8, 1>}, {transform_indices = @transform_3, window_bounds = array<i64: 8, 256>}]} {
    %c8_i32 = arith.constant 8 : i32
    %0 = arith.muli %arg0, %c8_i32 : i32
    %1 = tpu.assume_multiple %0, 8 : i32
    %2 = arith.index_cast %1 : i32 to index
    %c0 = arith.constant 0 : index
    %3 = vector.load %arg3[%2, %c0] : memref<8x1xf32, #tpu.memory_space<vmem>>, vector<8x1xf32>
    %4 = arith.index_cast %1 : i32 to index
    %c0_0 = arith.constant 0 : index
    %5 = vector.load %arg4[%4, %c0_0] : memref<8x1xf32, #tpu.memory_space<vmem>>, vector<8x1xf32>
    %c0_1 = arith.constant 0 : index
    %c0_2 = arith.constant 0 : index
    %6 = vector.load %arg2[%c0_1, %c0_2] : memref<8x256xf32, #tpu.memory_space<vmem>>, vector<8x256xf32>
    %7 = vector.broadcast %3 : vector<8x1xf32> to vector<8x256xf32>
    %8 = arith.mulf %6, %7 : vector<8x256xf32>
    %9 = vector.broadcast %5 : vector<8x1xf32> to vector<8x256xf32>
    %10 = arith.addf %8, %9 : vector<8x256xf32>
    %c0_3 = arith.constant 0 : index
    %c0_4 = arith.constant 0 : index
    %11 = vector.load %arg5[%c0_3, %c0_4] : memref<8x256xf32, #tpu.memory_space<vmem>>, vector<8x256xf32>
    tpu.vector_store %arg5[%c0_3, %c0_4], %10 {strides = array<i32>} : memref<8x256xf32, #tpu.memory_space<vmem>>, vector<8x256xf32>,
    return
  }
  func.func @transform_0(%arg0: i32, %arg1: i32) -> (i32, i32) {
    %c0_i32 = arith.constant 0 : i32
    return %arg0, %arg1 : i32, i32
  }
  func.func @transform_1(%arg0: i32, %arg1: i32) -> (i32, i32) {
    %c0_i32 = arith.constant 0 : i32
    %c0_i32_0 = arith.constant 0 : i32
    %c0_i32_1 = arith.constant 0 : i32
    return %c0_i32, %c0_i32_0 : i32, i32
  }
  func.func @transform_2(%arg0: i32, %arg1: i32) -> (i32, i32) {
    %c0_i32 = arith.constant 0 : i32
    %c0_i32_0 = arith.constant 0 : i32
    %c0_i32_1 = arith.constant 0 : i32
    return %c0_i32, %c0_i32_0 : i32, i32
  }
  func.func @transform_3(%arg0: i32, %arg1: i32) -> (i32, i32) {
    %c0_i32 = arith.constant 0 : i32
    return %arg0, %arg1 : i32, i32
  }
}

</mosaic_0001>

<llo_original>
// kernel: cbn_forward.2
$region0: #{cbn_forward.2}
  #allocation0 [shape = 'u32[]', space=smem, size = 0x4, offset = 0x4, fixed_abs, tag = 'smem constant byte address 0x4 - core index']
  #allocation1 [shape = 'u32[144,128]{1,0:T(1,128)}', space=vmem, size = 0x12000, scoped, tag = 'internal scratch']
  #allocation2 [shape = 'f32[3]{0:T(128)}', space=smem, size = 0x200, scoped, tag = 'scratch operand']
  %s0 = inlined_call_operand.vmem [shape: f32[8,256], index: 0, kind: input, shape index: {}]
  %s1 = inlined_call_operand.vmem [shape: f32[8,128], index: 1, kind: output, shape index: {}]
  %s2 = sld [smem:[#allocation0]]
  $region22: #{cbn_forward.2} parent=0
    _
  %s4 = ssub.s32 1, %s2
  %s5 = scalar_select 0, %s4, %s2
  // Predicated region
  $region2: #{cbn_forward.2} parent=0 // pred_check
    _
  $region3: #{cbn_forward.2} parent=0 // pred_check_branch
    %7 = sbr.rel (0) target = $region5
  $region4: #{cbn_forward.2} parent=0 // pred_region
    %s8 = sadd.s32 0, 0
    %p9 = scmp.lt.s32.totalorder %s8, 0
    %s10 = scalar_select %p9, %s8, 0
    %s11 = smul.addr %s10, 2
    %s12 = smul.addr %s11, 8
    %s13 = scalar_lea.vmem %s0, %s12
    %s14 = sadd.s32 0, 0
  $region5: #{cbn_forward.2} parent=0 // pred_fallthru
    _
  %s15 = sadd.s32 0, 0
  %p16 = scmp.lt.s32.totalorder %s15, 0
  %s17 = scalar_select %p16, %s15, 0
  %s18 = smul.addr %s17, 2
  %s19 = smul.addr %s18, 8
  %s20 = scalar_lea.vmem %s0, %s19
  %s21 = sadd.s32 0, 0
  %p22 = scmp.lt.s32.totalorder %s21, 0
  %s23 = scalar_select %p22, %s21, 0
  %s24 = smul.addr %s23, 2
  %s25 = smul.addr %s24, 8
  %s26 = scalar_lea.vmem %s0, %s25
  %s27 = sadd.s32 0, 0
  %p28 = scmp.eq.s32.totalorder 0, 0
  %p29 = scmp.eq.s32.totalorder 0, 0
  %p30 = pnand %p28, %p29
  %p31 = pneg %p30
  // Predicated region
  $region6: #{cbn_forward.2} parent=0 // pred_check
    _
  $region7: #{cbn_forward.2} parent=0 // pred_check_branch
    %33 = sbr.rel (%p30) target = $region9
  $region8: #{cbn_forward.2} parent=0 // pred_region
    %s34 = scalar_lea.smem [#allocation2], 0
    %35 = sst [smem:[%s34]] 0.0
    %s36 = scalar_lea.smem [#allocation2], 1
    %37 = sst [smem:[%s36]] 0.0
    %s38 = scalar_lea.smem [#allocation2], 2
    %39 = sst [smem:[%s38]] 0.0
  $region9: #{cbn_forward.2} parent=0 // pred_fallthru
    _
  %v40 = vld [vmem:[%s26] sm:$0xff]
  %v41 = vld [vmem:[%s26 + $0x8] sm:$0xff]
  %v42 = vadd.f32 %v40, %v41
  %43 = vadd.xlane.f32.xlu0 %v42
  %v44 = vpop.xlane.xlu0 %43
  %v45 = vrot.slane %v44, 4
  %v46 = vadd.f32 %v44, %v45
  %v47 = vrot.slane %v46, 2
  %v48 = vadd.f32 %v46, %v47
  %v49 = vrot.slane %v48, 1
  %v50 = vadd.f32 %v48, %v49
  %s51 = vtos %v50
  %v52 = vmul.f32 %v40, %v40
  %v53 = vmul.f32 %v41, %v41
  %v54 = vadd.f32 %v52, %v53
  %55 = vadd.xlane.f32.xlu0 %v54
  %v56 = vpop.xlane.xlu0 %55
  %v57 = vrot.slane %v56, 4
  %v58 = vadd.f32 %v56, %v57
  %v59 = vrot.slane %v58, 2
  %v60 = vadd.f32 %v58, %v59
  %v61 = vrot.slane %v60, 1
  %v62 = vadd.f32 %v60, %v61
  %s63 = vtos %v62
  %s64 = smul.u32 0, 256
  %s65 = ssub.s32 256, %s64
  %p66 = scmp.lt.s32.totalorder %s65, 256
  %s67 = scalar_select %p66, %s65, 256
  %s68 = scvt.s32.f32 %s67
  %s69 = smul.f32 %s68, 8.0
  %v70 = vstv %s69
  %v71 = vrcp.pop %v70
  %s72 = vtos %v71
  %s73 = smul.f32 %s51, %s72
  %s74 = smul.f32 %s51, %s73
  %s75 = ssub.f32 %s63, %s74
  %s76 = sld [smem:[#allocation2]]
  %s77 = sadd.f32 %s76, %s69
  %s78 = sld [smem:[#allocation2 + $0x1]]
  %s79 = ssub.f32 %s73, %s78
  %v80 = vstv %s77
  %v81 = vrcp.pop %v80
  %s82 = vtos %v81
  %s83 = smul.f32 %s69, %s82
  %s84 = smul.f32 %s79, %s83
  %s85 = sadd.f32 %s78, %s84
  %s86 = scalar_lea.smem [#allocation2], 1
  %87 = sst [smem:[%s86]] %s85
  %s88 = sld [smem:[#allocation2 + $0x2]]
  %s89 = sadd.f32 %s88, %s75
  %s90 = smul.f32 %s79, %s79
  %s91 = smul.f32 %s76, %s69
  %v92 = vstv %s77
  %v93 = vrcp.pop %v92
  %s94 = vtos %v93
  %s95 = smul.f32 %s91, %s94
  %s96 = smul.f32 %s90, %s95
  %s97 = sadd.f32 %s89, %s96
  %s98 = scalar_lea.smem [#allocation2], 2
  %99 = sst [smem:[%s98]] %s97
  %s100 = scalar_lea.smem [#allocation2], 0
  %101 = sst [smem:[%s100]] %s77
  // Predicated region
  $region10: #{cbn_forward.2} parent=0 // pred_check
    _
  $region11: #{cbn_forward.2} parent=0 // pred_check_branch
    %103 = sbr.rel (%p30) target = $region13
  $region12: #{cbn_forward.2} parent=0 // pred_region
    %v104 = vlaneseq
    %v105 = vand.u32 %v104, 127
    %vm106 = vcmp.eq.s32.totalorder %v105, 0
    %s107 = sld [smem:[#allocation2]]
    %vm108 = vcmp.eq.s32.totalorder %v105, 1
    %s109 = sld [smem:[#allocation2 + $0x1]]
    %vm110 = vcmp.eq.s32.totalorder %v105, 2
    %s111 = sld [smem:[#allocation2 + $0x2]]
    %v112 = vstv %s111
    %v113 = vsel %vm110, %v112, 0.0
    %v114 = vstv %s109
    %v115 = vsel %vm108, %v114, %v113
    %v116 = vstv %s107
    %v117 = vsel %vm106, %v116, %v115
    %118 = vst [vmem:[%s1] sm:$0xff] %v117
  $region13: #{cbn_forward.2} parent=0 // pred_fallthru
    _
  // Predicated region
  $region14: #{cbn_forward.2} parent=0 // pred_check
    _
  $region15: #{cbn_forward.2} parent=0 // pred_check_branch
    %120 = sbr.rel (0) target = $region17
  $region16: #{cbn_forward.2} parent=0 // pred_region
    _
  $region17: #{cbn_forward.2} parent=0 // pred_fallthru
    _
  // Predicated region
  $region18: #{cbn_forward.2} parent=0 // pred_check
    _
  $region19: #{cbn_forward.2} parent=0 // pred_check_branch
    %122 = sbr.rel (0) target = $region21
  $region20: #{cbn_forward.2} parent=0 // pred_region
    _
  $region21: #{cbn_forward.2} parent=0 // pred_fallthru
    _

// kernel: cbn_forward.3
$region0: #{cbn_forward.3}
  #allocation0 [shape = 'u32[]', space=smem, size = 0x4, offset = 0x4, fixed_abs, tag = 'smem constant byte address 0x4 - core index']
  #allocation1 [shape = 'u32[144,128]{1,0:T(1,128)}', space=vmem, size = 0x12000, scoped, tag = 'internal scratch']
  %s0 = inlined_call_operand.vmem [shape: f32[8,256], index: 0, kind: input, shape index: {}]
  %s1 = inlined_call_operand.vmem [shape: f32[8,1], index: 1, kind: input, shape index: {}]
  %s2 = inlined_call_operand.vmem [shape: f32[8,1], index: 2, kind: input, shape index: {}]
  %s3 = inlined_call_operand.vmem [shape: f32[8,256], index: 3, kind: output, shape index: {}]
  %s4 = sld [smem:[#allocation0]]
  $region22: #{cbn_forward.3} parent=0
    _
  %s6 = ssub.s32 1, %s4
  %s7 = scalar_select 0, %s6, %s4
  // Predicated region
  $region2: #{cbn_forward.3} parent=0 // pred_check
    _
  $region3: #{cbn_forward.3} parent=0 // pred_check_branch
    %9 = sbr.rel (0) target = $region5
  $region4: #{cbn_forward.3} parent=0 // pred_region
    _
  $region5: #{cbn_forward.3} parent=0 // pred_fallthru
    _
  // Predicated region
  $region6: #{cbn_forward.3} parent=0 // pred_check
    _
  $region7: #{cbn_forward.3} parent=0 // pred_check_branch
    %11 = sbr.rel (0) target = $region9
  $region8: #{cbn_forward.3} parent=0 // pred_region
    _
  $region9: #{cbn_forward.3} parent=0 // pred_fallthru
    _
  // Predicated region
  $region10: #{cbn_forward.3} parent=0 // pred_check
    _
  $region11: #{cbn_forward.3} parent=0 // pred_check_branch
    %13 = sbr.rel (0) target = $region13
  $region12: #{cbn_forward.3} parent=0 // pred_region
    _
  $region13: #{cbn_forward.3} parent=0 // pred_fallthru
    _
  %s14 = smul.u32 0, 8
  %s15 = scalar_lea.vmem %s1, %s14
  %v16 = vld [vmem:[%s15] sm:$0xff]
  %s17 = scalar_lea.vmem %s2, %s14
  %v18 = vld [vmem:[%s17] sm:$0xff]
  %v19 = vld [vmem:[%s0] sm:$0xff]
  %v20 = vld [vmem:[%s0 + $0x8] sm:$0xff]
  %22 = vset.pattern.permute.xlu0 0
  %23 = vperm.xlu0 %22, %v16
  %v24 = vpop.permute.xlu0 %23
  %v26 = vmul.f32 %v19, %v24
  %v27 = vmul.f32 %v20, %v24
  %29 = vset.pattern.permute.xlu0 0
  %30 = vperm.xlu0 %29, %v18
  %v31 = vpop.permute.xlu0 %30
  %v33 = vadd.f32 %v26, %v31
  %v34 = vadd.f32 %v27, %v31
  %35 = vst [vmem:[%s3] sm:$0xff] %v33
  %36 = vst [vmem:[%s3 + $0x8] sm:$0xff] %v34
  // Predicated region
  $region14: #{cbn_forward.3} parent=0 // pred_check
    _
  $region15: #{cbn_forward.3} parent=0 // pred_check_branch
    %38 = sbr.rel (0) target = $region17
  $region16: #{cbn_forward.3} parent=0 // pred_region
    _
  $region17: #{cbn_forward.3} parent=0 // pred_fallthru
    _
  // Predicated region
  $region18: #{cbn_forward.3} parent=0 // pred_check
    _
  $region19: #{cbn_forward.3} parent=0 // pred_check_branch
    %40 = sbr.rel (0) target = $region21
  $region20: #{cbn_forward.3} parent=0 // pred_region
    _
  $region21: #{cbn_forward.3} parent=0 // pred_fallthru
    _

</llo_original>
